<compile_context>
chip_gen: v6e
topology: v6e:2x2x1
jax: 0.10.0
libtpu: 0.0.40
codegen_flags: <defaults>
</compile_context>

<pallas_src>
import functools

import numpy as np
import jax
import jax.numpy as jnp
from jax.experimental import pallas as pl
from jax.experimental.pallas import tpu as pltpu


def _round_up(x, m):
    return (x + m - 1) // m * m


def _pick_tm(M):
    """M-tile: large, 256/128-aligned, divides M (no pad / slice copy), >=2 steps."""
    if M < 512:
        return _round_up(M, 8)                  # tiny problem: single step
    for cand in (1024, 512, 256, 128):
        if M % cand == 0 and M // cand >= 2:
            return cand
    return 512                                  # fall back to padding M


# ----------------------------------------------------------------------------
# Pallas kernel: fused (patches @ W + b) [+ LayerNorm]
# ----------------------------------------------------------------------------
def patch_embed_kernel(x_ref, w_ref, p_ref, o_ref, *, inv_e, eps, apply_norm):
    """One M-tile per grid step.

    x_ref : (TM, Kp)  bf16  patchified input rows (K zero-padded to Kp)
    w_ref : (Kp, Ep)  bf16  projection weight (zero-padded), VMEM-resident
    p_ref : (8, Ep)   f32   packed params: row0=bias, row1=gamma, row2=beta,
                            row3=lane mask (1.0 on the E valid lanes, else 0)
    o_ref : (TM, Ep)        output (lane-dense; padded lanes are exactly 0)
    """
    # bf16 operands, f32 accumulation on the MXU.
    y = jnp.dot(x_ref[...], w_ref[...], preferred_element_type=jnp.float32)
    y = y + p_ref[0:1, :]
    if apply_norm:
        gamma = p_ref[1:2, :]
        beta = p_ref[2:3, :]
        lane_mask = p_ref[3:4, :]
        # Padded lanes of y are exactly 0 (zero weight cols / zero bias), so
        # sum(y) over Ep lanes * 1/E is the exact mean over the E real lanes.
        mu = jnp.sum(y, axis=-1, keepdims=True) * inv_e
        # Two-pass, NaN-safe variance; mask kills the (-mu) in padded lanes.
        d = (y - mu) * lane_mask
        var = jnp.sum(d * d, axis=-1, keepdims=True) * inv_e
        y = d * jax.lax.rsqrt(var + eps) * gamma + beta
    o_ref[...] = y.astype(o_ref.dtype)


# ----------------------------------------------------------------------------
# Wrapper
# ----------------------------------------------------------------------------
def patch_embed_pallas(x, conv_w, conv_b, norm_g=None, norm_b=None,
                       *, patch_size, eps=1e-5, tm=None, out_dtype=jnp.float32):
    B, Cin, H, W = x.shape
    p = patch_size
    assert H % p == 0 and W % p == 0, "input size must match patch grid"
    Ho, Wo = H // p, W // p
    E = conv_w.shape[0]
    K = Cin * p * p
    L = Ho * Wo
    M = B * L

    # ---- MXU / lane alignment -----------------------------------------------
    Kp = _round_up(K, 128)
    Ep = _round_up(E, 128)

    # ---- patchify (layout glue, plain JAX): NCHW -> (B*L, K) in bf16 --------
    # Feature order is (c, i, j), matching conv-weight flattening below.
    patches = x.reshape(B, Cin, Ho, p, Wo, p)
    patches = patches.transpose(0, 2, 4, 1, 3, 5).reshape(M, K)
    patches = patches.astype(jnp.bfloat16)
    if Kp != K:
        patches = jnp.pad(patches, ((0, 0), (0, Kp - K)))

    # ---- M tiling ------------------------------------------------------------
    if tm is None:
        tm = _pick_tm(M)
    Mp = _round_up(M, tm)
    if Mp != M:
        patches = jnp.pad(patches, ((0, Mp - M), (0, 0)))

    # ---- weight: (Kp, Ep) bf16, zero-padded ---------------------------------
    w2d = conv_w.reshape(E, K).T.astype(jnp.bfloat16)          # (K, E)
    w2d = jnp.pad(w2d, ((0, Kp - K), (0, Ep - E)))

    # ---- packed params: (8, Ep) f32 -----------------------------------------
    apply_norm = norm_g is not None
    params = jnp.zeros((8, Ep), jnp.float32)
    params = params.at[0, :E].set(conv_b.astype(jnp.float32))          # bias
    if apply_norm:
        params = params.at[1, :E].set(norm_g.astype(jnp.float32))      # gamma
        params = params.at[2, :E].set(norm_b.astype(jnp.float32))      # beta
    params = params.at[3, :E].set(1.0)                                 # lane mask

    kernel = functools.partial(patch_embed_kernel,
                               inv_e=1.0 / float(E), eps=float(eps),
                               apply_norm=apply_norm)

    out_itemsize = jnp.dtype(out_dtype).itemsize
    # Double-buffered x/out tiles + (double-buffered) weight + params + slack.
    vmem_need = (2 * tm * Kp * 2 + 2 * tm * Ep * out_itemsize
                 + 2 * Kp * Ep * 2 + 2 * 8 * Ep * 4)
    vmem_limit = int(min(max(vmem_need + (4 << 20), 32 << 20), 64 << 20))

    cost = pl.CostEstimate(
        flops=2 * Mp * Kp * Ep,
        transcendentals=0,
        bytes_accessed=Mp * Kp * 2 + Kp * Ep * 2 + 8 * Ep * 4 + Mp * Ep * out_itemsize,
    )

    out = pl.pallas_call(
        kernel,
        out_shape=jax.ShapeDtypeStruct((Mp, Ep), out_dtype),
        grid=(Mp // tm,),
        in_specs=[
            pl.BlockSpec((tm, Kp), lambda i: (i, 0)),     # patch rows (bf16)
            pl.BlockSpec((Kp, Ep), lambda i: (0, 0)),     # weight, VMEM-resident
            pl.BlockSpec((8, Ep), lambda i: (0, 0)),      # packed bias/gamma/beta/mask
        ],
        out_specs=pl.BlockSpec((tm, Ep), lambda i: (i, 0)),
        compiler_params=pltpu.CompilerParams(
            dimension_semantics=("parallel",),
            vmem_limit_bytes=vmem_limit),
        cost_estimate=cost,
    )(patches, w2d, params)

    if Mp != M or Ep != E:           # no-op copy avoided when shapes already align
        out = out[:M, :E]
    return out.reshape(B, L, E)


# ----------------------------------------------------------------------------
# References for correctness checks
# ----------------------------------------------------------------------------
def _layer_norm_ref(y, g, b, eps=1e-5):
    mu = jnp.mean(y, axis=-1, keepdims=True)
    var = jnp.mean((y - mu) ** 2, axis=-1, keepdims=True)
    return (y - mu) * jax.lax.rsqrt(var + eps) * g + b


def patch_embed_reference_conv(x, conv_w, conv_b, norm_g, norm_b,
                               *, patch_size, eps=1e-5):
    """Full-f32 reference using lax conv (mirrors the PyTorch module exactly)."""
    p = patch_size
    dn = jax.lax.conv_dimension_numbers(x.shape, conv_w.shape,
                                        ('NCHW', 'OIHW', 'NCHW'))
    y = jax.lax.conv_general_dilated(x, conv_w, (p, p), 'VALID',
                                     dimension_numbers=dn,
                                     precision=jax.lax.Precision.HIGHEST)
    y = y + conv_b[None, :, None, None]
    B, E, Ho, Wo = y.shape
    y = y.reshape(B, E, Ho * Wo).transpose(0, 2, 1)      # flatten(2).transpose(1,2)
    if norm_g is not None:
        y = _layer_norm_ref(y, norm_g, norm_b, eps)
    return y


def patch_embed_reference_bf16(x, conv_w, conv_b, norm_g, norm_b,
                               *, patch_size, eps=1e-5):
    """Same math as the Pallas kernel (bf16 matmul operands, f32 acc)."""
    p = patch_size
    B, Cin, H, W = x.shape
    Ho, Wo = H // p, W // p
    E = conv_w.shape[0]
    K = Cin * p * p
    patches = x.reshape(B, Cin, Ho, p, Wo, p)
    patches = patches.transpose(0, 2, 4, 1, 3, 5).reshape(B * Ho * Wo, K)
    w2d = conv_w.reshape(E, K).T.astype(jnp.bfloat16)
    y = jnp.dot(patches.astype(jnp.bfloat16), w2d,
                preferred_element_type=jnp.float32) + conv_b
    y = y.reshape(B, Ho * Wo, E)
    if norm_g is not None:
        y = _layer_norm_ref(y, norm_g, norm_b, eps)
    return y


# ----------------------------------------------------------------------------
if __name__ == "__main__":
    B, Cin, H, W = 2, 4, 16, 16
    patch_size = 4
    embed_dim = 32
    L = (H // patch_size) * (W // patch_size)

    key = jax.random.PRNGKey(0)
    kx, kw, kb, kg, knb = jax.random.split(key, 5)
    x = jax.random.normal(kx, (B, Cin, H, W), jnp.float32)
    conv_w = 0.05 * jax.random.normal(
        kw, (embed_dim, Cin, patch_size, patch_size), jnp.float32)
    conv_b = 0.05 * jax.random.normal(kb, (embed_dim,), jnp.float32)
    norm_g = 1.0 + 0.05 * jax.random.normal(kg, (embed_dim,), jnp.float32)
    norm_b = 0.05 * jax.random.normal(knb, (embed_dim,), jnp.float32)

    fwd = jax.jit(functools.partial(patch_embed_pallas, patch_size=patch_size))

    # --- with norm_layer = LayerNorm -----------------------------------------
    out = jax.block_until_ready(fwd(x, conv_w, conv_b, norm_g, norm_b))
    assert out.shape == (B, L, embed_dim), out.shape

    ref_bf16 = jax.block_until_ready(patch_embed_reference_bf16(
        x, conv_w, conv_b, norm_g, norm_b, patch_size=patch_size))
    np.testing.assert_allclose(np.asarray(out), np.asarray(ref_bf16),
                               rtol=2e-3, atol=2e-3)

    ref_f32 = jax.block_until_ready(patch_embed_reference_conv(
        x, conv_w, conv_b, norm_g, norm_b, patch_size=patch_size))
    np.testing.assert_allclose(np.asarray(out), np.asarray(ref_f32),
                               rtol=3e-2, atol=3e-2)

    # --- with norm_layer = None (module default) ------------------------------
    out2 = jax.block_until_ready(fwd(x, conv_w, conv_b, None, None))
    assert out2.shape == (B, L, embed_dim), out2.shape
    ref2 = jax.block_until_ready(patch_embed_reference_conv(
        x, conv_w, conv_b, None, None, patch_size=patch_size))
    np.testing.assert_allclose(np.asarray(out2), np.asarray(ref2),
                               rtol=3e-2, atol=3e-2)

    print("KERNEL_OK")
</pallas_src>

<mosaic_0001>
module attributes {stable_mosaic.version = 11 : i64} {
  func.func @patch_embed_kernel(%arg0: i32, %arg1: memref<32x128xbf16, #tpu.memory_space<vmem>>, %arg2: memref<128x128xbf16, #tpu.memory_space<vmem>>, %arg3: memref<8x128xf32, #tpu.memory_space<vmem>>, %arg4: memref<32x128xf32, #tpu.memory_space<vmem>>) attributes {dimension_semantics = [#tpu.dimension_semantics<parallel>], iteration_bounds = array<i64: 1>, scalar_prefetch = 0 : i64, scratch_operands = 0 : i64, tpu.core_type = #tpu.core_type<tc>, window_params = [{transform_indices = @transform_0, window_bounds = array<i64: 32, 128>}, {pipeline_mode = #tpu.pipeline_mode<synchronous>, transform_indices = @transform_1, window_bounds = array<i64: 128, 128>}, {pipeline_mode = #tpu.pipeline_mode<synchronous>, transform_indices = @transform_2, window_bounds = array<i64: 8, 128>}, {transform_indices = @transform_3, window_bounds = array<i64: 32, 128>}]} {
    %c0 = arith.constant 0 : index
    %c0_0 = arith.constant 0 : index
    %0 = vector.load %arg1[%c0, %c0_0] : memref<32x128xbf16, #tpu.memory_space<vmem>>, vector<32x128xbf16>
    %c0_1 = arith.constant 0 : index
    %c0_2 = arith.constant 0 : index
    %1 = vector.load %arg2[%c0_1, %c0_2] : memref<128x128xbf16, #tpu.memory_space<vmem>>, vector<128x128xbf16>
    %cst = arith.constant dense<0.000000e+00> : vector<32x128xf32>
    %2 = tpu.matmul %0, %1, %cst {dimension_numbers = #tpu.dot_dimension_numbers<[1], [0], [0], [1], [0, 0, 1, 1], [], []>} : vector<32x128xbf16>, vector<128x128xbf16>, vector<32x128xf32> -> vector<32x128xf32>
    %c0_3 = arith.constant 0 : index
    %c0_4 = arith.constant 0 : index
    %3 = vector.load %arg3[%c0_3, %c0_4] : memref<8x128xf32, #tpu.memory_space<vmem>>, vector<1x128xf32>
    %4 = vector.broadcast %3 : vector<1x128xf32> to vector<32x128xf32>
    %5 = arith.addf %2, %4 : vector<32x128xf32>
    %c1 = arith.constant 1 : index
    %c0_5 = arith.constant 0 : index
    %6 = vector.load %arg3[%c1, %c0_5] : memref<8x128xf32, #tpu.memory_space<vmem>>, vector<1x128xf32>
    %c2 = arith.constant 2 : index
    %c0_6 = arith.constant 0 : index
    %7 = vector.load %arg3[%c2, %c0_6] : memref<8x128xf32, #tpu.memory_space<vmem>>, vector<1x128xf32>
    %c3 = arith.constant 3 : index
    %c0_7 = arith.constant 0 : index
    %8 = vector.load %arg3[%c3, %c0_7] : memref<8x128xf32, #tpu.memory_space<vmem>>, vector<1x128xf32>
    %cst_8 = arith.constant dense<0.000000e+00> : vector<32xf32>
    %9 = vector.multi_reduction <add>, %5, %cst_8 [1] : vector<32x128xf32> to vector<32xf32>
    %10 = vector.shape_cast %9 : vector<32xf32> to vector<32x1xf32>
    %cst_9 = arith.constant 3.125000e-02 : f32
    %11 = vector.broadcast %cst_9 : f32 to vector<32x1xf32>
    %12 = arith.mulf %10, %11 : vector<32x1xf32>
    %13 = vector.broadcast %12 : vector<32x1xf32> to vector<32x128xf32>
    %14 = arith.subf %5, %13 : vector<32x128xf32>
    %15 = vector.broadcast %8 : vector<1x128xf32> to vector<32x128xf32>
    %16 = arith.mulf %14, %15 : vector<32x128xf32>
    %17 = arith.mulf %16, %16 : vector<32x128xf32>
    %cst_10 = arith.constant dense<0.000000e+00> : vector<32xf32>
    %18 = vector.multi_reduction <add>, %17, %cst_10 [1] : vector<32x128xf32> to vector<32xf32>
    %19 = vector.shape_cast %18 : vector<32xf32> to vector<32x1xf32>
    %cst_11 = arith.constant 3.125000e-02 : f32
    %20 = vector.broadcast %cst_11 : f32 to vector<32x1xf32>
    %21 = arith.mulf %19, %20 : vector<32x1xf32>
    %cst_12 = arith.constant 9.99999974E-6 : f32
    %22 = vector.broadcast %cst_12 : f32 to vector<32x1xf32>
    %23 = arith.addf %21, %22 : vector<32x1xf32>
    %24 = math.rsqrt %23 : vector<32x1xf32>
    %25 = vector.broadcast %24 : vector<32x1xf32> to vector<32x128xf32>
    %26 = arith.mulf %16, %25 : vector<32x128xf32>
    %27 = vector.broadcast %6 : vector<1x128xf32> to vector<32x128xf32>
    %28 = arith.mulf %26, %27 : vector<32x128xf32>
    %29 = vector.broadcast %7 : vector<1x128xf32> to vector<32x128xf32>
    %30 = arith.addf %28, %29 : vector<32x128xf32>
    %c0_13 = arith.constant 0 : index
    %c0_14 = arith.constant 0 : index
    %31 = vector.load %arg4[%c0_13, %c0_14] : memref<32x128xf32, #tpu.memory_space<vmem>>, vector<32x128xf32>
    tpu.vector_store %arg4[%c0_13, %c0_14], %30 {strides = array<i32>} : memref<32x128xf32, #tpu.memory_space<vmem>>, vector<32x128xf32>,
    return
  }
  func.func @transform_0(%arg0: i32) -> (i32, i32) {
    %c0_i32 = arith.constant 0 : i32
    %c0_i32_0 = arith.constant 0 : i32
    return %arg0, %c0_i32 : i32, i32
  }
  func.func @transform_1(%arg0: i32) -> (i32, i32) {
    %c0_i32 = arith.constant 0 : i32
    %c0_i32_0 = arith.constant 0 : i32
    %c0_i32_1 = arith.constant 0 : i32
    return %c0_i32, %c0_i32_0 : i32, i32
  }
  func.func @transform_2(%arg0: i32) -> (i32, i32) {
    %c0_i32 = arith.constant 0 : i32
    %c0_i32_0 = arith.constant 0 : i32
    %c0_i32_1 = arith.constant 0 : i32
    return %c0_i32, %c0_i32_0 : i32, i32
  }
  func.func @transform_3(%arg0: i32) -> (i32, i32) {
    %c0_i32 = arith.constant 0 : i32
    %c0_i32_0 = arith.constant 0 : i32
    return %arg0, %c0_i32 : i32, i32
  }
}

</mosaic_0001>

<llo_original>
// kernel: patch_embed_pallas.1
$region0: #{patch_embed_pallas.1}
  #allocation0 [shape = 'u32[]', space=smem, size = 0x4, offset = 0x4, fixed_abs, tag = 'smem constant byte address 0x4 - core index']
  #allocation1 [shape = 'u32[144,128]{1,0:T(1,128)}', space=vmem, size = 0x12000, scoped, tag = 'internal scratch']
  %s0 = inlined_call_operand.vmem [shape: bf16[32,128], index: 0, kind: input, shape index: {}]
  %s1 = inlined_call_operand.vmem [shape: bf16[128,128], index: 1, kind: input, shape index: {}]
  %s2 = inlined_call_operand.vmem [shape: f32[8,128], index: 2, kind: input, shape index: {}]
  %s3 = inlined_call_operand.hbm [shape: f32[32,128], index: 3, kind: output, shape index: {}]
  %s4 = sld [smem:[#allocation0]]
  $region22: #{patch_embed_pallas.1} parent=0
    _
  %s6 = ssub.s32 1, %s4
  %s7 = scalar_select 0, %s6, %s4
  $region1: #{patch_embed_pallas.1} parent=0
    #allocation2 [shape = 'u8[16384]{0}', space=vmem, size = 0x4000, scoped, tag = 'output window, operand 0, single buffered']
    #allocation3 [shape = 's32[1]{0}', space=sflag, size = 0x4, scoped, tag = 'scoped memory for patch_embed_pallas.1']
    %8 = vsyncpa [#allocation3], 0
    // Predicated region
    $region2: #{patch_embed_pallas.1} parent=1 // pred_check
      _
    $region3: #{patch_embed_pallas.1} parent=1 // pred_check_branch
      %10 = sbr.rel (0) target = $region5
    $region4: #{patch_embed_pallas.1} parent=1 // pred_region
      _
    $region5: #{patch_embed_pallas.1} parent=1 // pred_fallthru
      _
    // Predicated region
    $region6: #{patch_embed_pallas.1} parent=1 // pred_check
      _
    $region7: #{patch_embed_pallas.1} parent=1 // pred_check_branch
      %12 = sbr.rel (0) target = $region9
    $region8: #{patch_embed_pallas.1} parent=1 // pred_region
      _
    $region9: #{patch_embed_pallas.1} parent=1 // pred_fallthru
      _
    // Predicated region
    $region10: #{patch_embed_pallas.1} parent=1 // pred_check
      _
    $region11: #{patch_embed_pallas.1} parent=1 // pred_check_branch
      %14 = sbr.rel (0) target = $region13
    $region12: #{patch_embed_pallas.1} parent=1 // pred_region
      _
    $region13: #{patch_embed_pallas.1} parent=1 // pred_fallthru
      _
    %v16 = vld [vmem:[%s0] sm:$0xf]
    %v17 = vld [vmem:[%s0 + $0x4] sm:$0xf]
    %v18 = vld [vmem:[%s0 + $0x8] sm:$0xf]
    %v19 = vld [vmem:[%s0 + $0xc] sm:$0xf]
    %v20 = vld [vmem:[%s1] sm:$0xf]
    %v21 = vld [vmem:[%s1 + $0x4] sm:$0xf]
    %v22 = vld [vmem:[%s1 + $0x8] sm:$0xf]
    %v23 = vld [vmem:[%s1 + $0xc] sm:$0xf]
    %v24 = vld [vmem:[%s1 + $0x10] sm:$0xf]
    %v25 = vld [vmem:[%s1 + $0x14] sm:$0xf]
    %v26 = vld [vmem:[%s1 + $0x18] sm:$0xf]
    %v27 = vld [vmem:[%s1 + $0x1c] sm:$0xf]
    %v28 = vld [vmem:[%s1 + $0x20] sm:$0xf]
    %v29 = vld [vmem:[%s1 + $0x24] sm:$0xf]
    %v30 = vld [vmem:[%s1 + $0x28] sm:$0xf]
    %v31 = vld [vmem:[%s1 + $0x2c] sm:$0xf]
    %v32 = vld [vmem:[%s1 + $0x30] sm:$0xf]
    %v33 = vld [vmem:[%s1 + $0x34] sm:$0xf]
    %v34 = vld [vmem:[%s1 + $0x38] sm:$0xf]
    %v35 = vld [vmem:[%s1 + $0x3c] sm:$0xf]
    %v36 = vld [vmem:[%s2] sm:$0x1]
    %v37 = vlaneseq
    %v38 = vshrl.u32 %v37, 7
    %v39 = vsub.s32 0, %v38
    %v40 = vrot.slane %v36, %v39
    %v45 = vunpack.c.l.b16 %v16
    %v46 = vunpack.c.l.b16 %v17
    %v47 = vunpack.c.l.b16 %v18
    %v48 = vunpack.c.l.b16 %v19
    %v49 = vpack.c.b16 %v46, %v45
    %v50 = vpack.c.b16 %v48, %v47
    %v69 = vunpack.c.l.b16 %v20
    %v70 = vunpack.c.l.b16 %v21
    %v71 = vunpack.c.l.b16 %v22
    %v72 = vunpack.c.l.b16 %v23
    %v73 = vunpack.c.l.b16 %v24
    %v74 = vunpack.c.l.b16 %v25
    %v75 = vunpack.c.l.b16 %v26
    %v76 = vunpack.c.l.b16 %v27
    %v77 = vunpack.c.l.b16 %v28
    %v78 = vunpack.c.l.b16 %v29
    %v79 = vunpack.c.l.b16 %v30
    %v80 = vunpack.c.l.b16 %v31
    %v81 = vunpack.c.l.b16 %v32
    %v82 = vunpack.c.l.b16 %v33
    %v83 = vunpack.c.l.b16 %v34
    %v84 = vunpack.c.l.b16 %v35
    %v85 = vpack.c.b16 %v70, %v69
    %v86 = vpack.c.b16 %v72, %v71
    %v87 = vpack.c.b16 %v74, %v73
    %v88 = vpack.c.b16 %v76, %v75
    %v89 = vpack.c.b16 %v78, %v77
    %v90 = vpack.c.b16 %v80, %v79
    %v91 = vpack.c.b16 %v82, %v81
    %v92 = vpack.c.b16 %v84, %v83
    %101 = vmatprep.subr.bf16.mxu0 0
    %102 = vmatpush1.bf16.msra.mxu0 %v92
    %103 = vmatprep.subr.bf16.mxu0 0
    %104 = vmatpush1.bf16.msra.mxu0 %v91
    %105 = vmatprep.subr.bf16.mxu0 0
    %106 = vmatpush1.bf16.msra.mxu0 %v90
    %107 = vmatprep.subr.bf16.mxu0 0
    %108 = vmatpush1.bf16.msra.mxu0 %v89
    %109 = vmatprep.subr.bf16.mxu0 0
    %110 = vmatpush1.bf16.msra.mxu0 %v88
    %111 = vmatprep.subr.bf16.mxu0 0
    %112 = vmatpush1.bf16.msra.mxu0 %v87
    %113 = vmatprep.subr.bf16.mxu0 0
    %114 = vmatpush1.bf16.msra.mxu0 %v86
    %115 = vmatprep.subr.bf16.mxu0 0
    %116 = vmatpush1.bf16.msra.mxu0 %v85
    %117 = vmatprep.subr.bf16.mxu0 0
    %118 = vmatpush2.bf16.msra.mxu0 0
    %119 = vmatprep.subr.bf16.mxu0 0
    %120 = vmatpush2.bf16.msra.mxu0 0
    %121 = vmatprep.subr.bf16.mxu0 0
    %122 = vmatpush2.bf16.msra.mxu0 0
    %123 = vmatprep.subr.bf16.mxu0 0
    %124 = vmatpush2.bf16.msra.mxu0 0
    %125 = vmatprep.subr.bf16.mxu0 0
    %126 = vmatpush2.bf16.msra.mxu0 0
    %127 = vmatprep.subr.bf16.mxu0 0
    %128 = vmatpush2.bf16.msra.mxu0 0
    %129 = vmatprep.subr.bf16.mxu0 0
    %130 = vmatpush2.bf16.msra.mxu0 0
    %131 = vmatprep.subr.bf16.mxu0 0
    %132 = vmatpush2.bf16.msra.mxu0 0
    %133 = vmatprep.mubr.bf16.mxu0 0
    %134 = vmatmul.mubr.bf16.gmra.mxu0 %v49
    %v135 = vpop.f32.mrf.mxu0
    %v136 = vadd.f32 %v40, %v135
    %v137 = vpop.f32.mrf.mxu0
    %v138 = vpop.f32.mrf.mxu0
    %v139 = vadd.f32 %v40, %v138
    %v140 = vpop.f32.mrf.mxu0
    %141 = vmatprep.mubr.bf16.mxu0 0
    %142 = vmatmul.mubr.bf16.gmra.mxu0 %v50
    %v143 = vpop.f32.mrf.mxu0
    %v144 = vadd.f32 %v40, %v143
    %v145 = vpop.f32.mrf.mxu0
    %v146 = vpop.f32.mrf.mxu0
    %v147 = vadd.f32 %v40, %v146
    %v148 = vpop.f32.mrf.mxu0
    %149 = vdwg.mxu0
    %v150 = vld [vmem:[%s2 + $0x1] sm:$0x1]
    %v151 = vld [vmem:[%s2 + $0x2] sm:$0x1]
    %v152 = vld [vmem:[%s2 + $0x3] sm:$0x1]
    %153 = vadd.xlane.f32.xlu0 %v136
    %v154 = vpop.xlane.xlu0 %153
    %155 = vadd.xlane.f32.xlu0 %v139
    %v156 = vpop.xlane.xlu0 %155
    %157 = vadd.xlane.f32.xlu0 %v144
    %v158 = vpop.xlane.xlu0 %157
    %159 = vadd.xlane.f32.xlu0 %v147
    %v160 = vpop.xlane.xlu0 %159
    %v161 = vmul.f32 %v154, 0.03125
    %v162 = vmul.f32 %v156, 0.03125
    %v163 = vmul.f32 %v158, 0.03125
    %v164 = vmul.f32 %v160, 0.03125
    %v165 = vsub.f32 %v136, %v161
    %v166 = vsub.f32 %v139, %v162
    %v167 = vsub.f32 %v144, %v163
    %v168 = vsub.f32 %v147, %v164
    %v169 = vlaneseq
    %v170 = vshrl.u32 %v169, 7
    %v171 = vsub.s32 0, %v170
    %v172 = vrot.slane %v152, %v171
    %v173 = vmul.f32 %v165, %v172
    %v174 = vmul.f32 %v166, %v172
    %v175 = vmul.f32 %v167, %v172
    %v176 = vmul.f32 %v168, %v172
    %v177 = vmul.f32 %v173, %v173
    %v178 = vmul.f32 %v174, %v174
    %v179 = vmul.f32 %v175, %v175
    %v180 = vmul.f32 %v176, %v176
    %181 = vadd.xlane.f32.xlu0 %v177
    %v182 = vpop.xlane.xlu0 %181
    %183 = vadd.xlane.f32.xlu0 %v178
    %v184 = vpop.xlane.xlu0 %183
    %185 = vadd.xlane.f32.xlu0 %v179
    %v186 = vpop.xlane.xlu0 %185
    %187 = vadd.xlane.f32.xlu0 %v180
    %v188 = vpop.xlane.xlu0 %187
    %v189 = vmul.f32 %v182, 0.03125
    %v190 = vmul.f32 %v184, 0.03125
    %v191 = vmul.f32 %v186, 0.03125
    %v192 = vmul.f32 %v188, 0.03125
    %v193 = vadd.f32 %v189, 1e-05
    %v194 = vadd.f32 %v190, 1e-05
    %v195 = vadd.f32 %v191, 1e-05
    %v196 = vadd.f32 %v192, 1e-05
    %v197 = vrsqrt.pop %v193
    %v198 = vrsqrt.pop %v194
    %v199 = vrsqrt.pop %v195
    %v200 = vrsqrt.pop %v196
    %v201 = vmul.f32 %v173, %v197
    %v202 = vmul.f32 %v174, %v198
    %v203 = vmul.f32 %v175, %v199
    %v204 = vmul.f32 %v176, %v200
    %v205 = vlaneseq
    %v206 = vshrl.u32 %v205, 7
    %v207 = vsub.s32 0, %v206
    %v208 = vrot.slane %v150, %v207
    %v209 = vmul.f32 %v201, %v208
    %v210 = vmul.f32 %v202, %v208
    %v211 = vmul.f32 %v203, %v208
    %v212 = vmul.f32 %v204, %v208
    %v213 = vlaneseq
    %v214 = vshrl.u32 %v213, 7
    %v215 = vsub.s32 0, %v214
    %v216 = vrot.slane %v151, %v215
    %v217 = vadd.f32 %v209, %v216
    %v218 = vadd.f32 %v210, %v216
    %v219 = vadd.f32 %v211, %v216
    %v220 = vadd.f32 %v212, %v216
    %221 = vst [vmem:[#allocation2] sm:$0xff] %v217
    %222 = vst [vmem:[#allocation2 + $0x8] sm:$0xff] %v218
    %223 = vst [vmem:[#allocation2 + $0x10] sm:$0xff] %v219
    %224 = vst [vmem:[#allocation2 + $0x18] sm:$0xff] %v220
    // Predicated region
    $region14: #{patch_embed_pallas.1} parent=1 // pred_check
      _
    $region15: #{patch_embed_pallas.1} parent=1 // pred_check_branch
      %226 = sbr.rel (0) target = $region17
    $region16: #{patch_embed_pallas.1} parent=1 // pred_region
      %s228 = ssub.s32 512, 512
      %229 = vsyncadd [#allocation3], %s228
      %s230 = sshll.u32 [#allocation2], 4
      %s231 = int_to_ptr.vmem [resolvable:$true] %s230
      %236 = dma.vmem_to_hbm [thread:$0]  %s231, 512, %s3, [#allocation3], 128, 128, 8
    $region17: #{patch_embed_pallas.1} parent=1 // pred_fallthru
      _
    // Predicated region
    $region18: #{patch_embed_pallas.1} parent=1 // pred_check
      _
    $region19: #{patch_embed_pallas.1} parent=1 // pred_check_branch
      %238 = sbr.rel (0) target = $region21
    $region20: #{patch_embed_pallas.1} parent=1 // pred_region
      %239 = dma.done [#allocation3], 512
    $region21: #{patch_embed_pallas.1} parent=1 // pred_fallthru
      _
    %240 = vsyncpa [#allocation3], 1

</llo_original>
